<compile_context>
chip_gen: v7x
topology: tpu7x:2x2x1
jax: 0.10.0
libtpu: 0.0.40
codegen_flags: <defaults>
</compile_context>

<pallas_src>
import jax
import jax.numpy as jnp
import numpy as np
from jax import lax
from jax.experimental import pallas as pl
from jax.experimental.pallas import tpu as pltpu


def _round_up(x, m):
    return (x + m - 1) // m * m


def _scatter_mean_kernel(tmin_ref, tmax_ref, inv_ref, x_ref, out_ref, acc_ref):
    j = pl.program_id(0)          # voxel-tile axis ("parallel")
    n = pl.program_id(1)          # point-tile axis (reduction, "arbitrary", last)

    tn = inv_ref.shape[0]
    tv = acc_ref.shape[1]
    c = out_ref.shape[0]

    @pl.when(n == 0)
    def _():
        acc_ref[...] = jnp.zeros_like(acc_ref)

    lo = j * tv
    # Points are sorted by voxel id; skip this (V-tile, N-tile) block if the
    # point tile's id range cannot intersect [lo, lo + tv).
    intersects = jnp.logical_and(tmax_ref[n] >= lo, tmin_ref[n] < lo + tv)

    @pl.when(intersects)
    def _():
        x = x_ref[...]                                        # (C+1, TN)
        # one_hot[p, v] = 1 iff inv[p] == lo + v   (padded points carry -1)
        v_ids = lo + lax.broadcasted_iota(jnp.int32, (tn, tv), 1)
        one_hot = (inv_ref[...] == v_ids).astype(x.dtype)     # (TN, TV)
        # Row C of x is all ones -> row C of acc accumulates the counts.
        acc_ref[...] += jnp.dot(x, one_hot,
                                preferred_element_type=jnp.float32)

    @pl.when(n == pl.num_programs(1) - 1)
    def _():
        sums = acc_ref[0:c, :]                                # (C, TV)
        counts = acc_ref[c:c + 1, :]                          # (1, TV)
        # f32 counts are exact up to 2^24 points per voxel.
        denom = jnp.maximum(counts, 1.0)
        out_ref[...] = (sums * pl.reciprocal(denom, approx=False)).astype(
            out_ref.dtype
        )


def dynamic_voxel_encoder(inputs, unq_inv, num_voxels, *, tile_n=256,
                          tile_v=512, sort_points=True):
    """scatter_mean(inputs, unq_inv, dim=0) with dim_size=num_voxels."""
    N, C = inputs.shape
    assert unq_inv.shape == (N,)
    unq_inv = unq_inv.astype(jnp.int32)

    if sort_points:
        # Sorting by voxel id makes the per-tile id ranges tight so most
        # (V-tile, N-tile) blocks are skipped inside the kernel.
        order = jnp.argsort(unq_inv)
        inputs = jnp.take(inputs, order, axis=0)
        unq_inv = jnp.take(unq_inv, order, axis=0)

    tile_n = min(tile_n, _round_up(N, 128))
    tile_v = min(tile_v, _round_up(num_voxels, 128))
    Np = _round_up(N, tile_n)
    Vp = _round_up(num_voxels, tile_v)
    n_pad = Np - N

    # (C+1, Np): features transposed (point axis lane-dense) + ones row so the
    # counts come out of the MXU matmul instead of an XLU reduction.
    x_t = jnp.concatenate([inputs.T, jnp.ones((1, N), inputs.dtype)], axis=0)
    if n_pad:
        x_t = jnp.pad(x_t, ((0, 0), (0, n_pad)))

    if n_pad:
        inv_for_max = jnp.concatenate(
            [unq_inv, jnp.full((n_pad,), -1, jnp.int32)])
        inv_for_min = jnp.concatenate(
            [unq_inv, jnp.full((n_pad,), jnp.iinfo(jnp.int32).max, jnp.int32)])
    else:
        inv_for_max = unq_inv
        inv_for_min = unq_inv
    # Padded points carry id -1 -> never match any voxel column.
    inv2d = inv_for_max.reshape(Np, 1)

    n_tiles = Np // tile_n
    v_tiles = Vp // tile_v
    tile_max = inv_for_max.reshape(n_tiles, tile_n).max(axis=1)
    tile_min = inv_for_min.reshape(n_tiles, tile_n).min(axis=1)

    itemsize = jnp.dtype(inputs.dtype).itemsize
    vmem_budget = int(
        4 * (C + 1) * tile_v                 # f32 accumulator
        + 2 * (C + 1) * tile_n * itemsize    # double-buffered x tile
        + 2 * tile_n * 128 * 4               # double-buffered inv tile (lane-padded)
        + 2 * C * tile_v * itemsize          # double-buffered out tile
        + 8 * tile_n * tile_v                # one-hot / iota working set + slack
    ) + (4 << 20)
    vmem_limit = min(max(vmem_budget, 32 << 20), 48 << 20)   # <= 64 MiB on v7x

    out = pl.pallas_call(
        _scatter_mean_kernel,
        out_shape=jax.ShapeDtypeStruct((C, Vp), inputs.dtype),
        grid_spec=pltpu.PrefetchScalarGridSpec(
            num_scalar_prefetch=2,
            grid=(v_tiles, n_tiles),
            in_specs=[
                pl.BlockSpec((tile_n, 1), lambda j, n, tmin, tmax: (n, 0)),
                pl.BlockSpec((C + 1, tile_n), lambda j, n, tmin, tmax: (0, n)),
            ],
            out_specs=pl.BlockSpec((C, tile_v), lambda j, n, tmin, tmax: (0, j)),
            scratch_shapes=[
                pltpu.VMEM((C + 1, tile_v), jnp.float32),     # sums + counts row
            ],
        ),
        compiler_params=pltpu.CompilerParams(
            dimension_semantics=("parallel", "arbitrary"),
            vmem_limit_bytes=vmem_limit,
        ),
    )(tile_min, tile_max, inv2d, x_t)

    # Drop padded voxel columns and return the module's (V, C) layout.
    return out[:, :num_voxels].T


def _reference_scatter_mean(inputs, unq_inv, num_voxels):
    sums = jax.ops.segment_sum(inputs, unq_inv, num_segments=num_voxels)
    counts = jax.ops.segment_sum(
        jnp.ones((inputs.shape[0],), inputs.dtype), unq_inv,
        num_segments=num_voxels)
    return sums / jnp.maximum(counts, 1.0)[:, None]


if __name__ == "__main__":
    key = jax.random.PRNGKey(0)
    k1, k2 = jax.random.split(key)

    N, C, V = 200, 16, 64  # points, point-feature channels, voxels
    inputs = jax.random.normal(k1, (N, C), dtype=jnp.float32)
    # unq_inv as produced by torch.unique(..., return_inverse=True): ids in [0, V)
    unq_inv = jax.random.randint(k2, (N,), 0, V, dtype=jnp.int32)

    out = dynamic_voxel_encoder(inputs, unq_inv, V)
    out = jax.block_until_ready(out)

    ref = _reference_scatter_mean(inputs, unq_inv, V)
    np.testing.assert_allclose(np.asarray(out), np.asarray(ref), rtol=1e-5, atol=1e-5)

    print("KERNEL_OK")
</pallas_src>

<mosaic_0001>
module attributes {stable_mosaic.version = 11 : i64} {
  func.func @_scatter_mean_kernel(%arg0: i32, %arg1: i32, %arg2: memref<1xi32, #tpu.memory_space<smem>>, %arg3: memref<1xi32, #tpu.memory_space<smem>>, %arg4: memref<256x1xi32, #tpu.memory_space<vmem>>, %arg5: memref<17x256xf32, #tpu.memory_space<vmem>>, %arg6: memref<16x128xf32, #tpu.memory_space<vmem>>, %arg7: memref<17x128xf32, #tpu.memory_space<vmem>>) attributes {dimension_semantics = [#tpu.dimension_semantics<parallel>, #tpu.dimension_semantics<arbitrary>], iteration_bounds = array<i64: 1, 1>, scalar_prefetch = 2 : i64, scratch_operands = 1 : i64, tpu.core_type = #tpu.core_type<tc>, window_params = [{transform_indices = @transform_0, window_bounds = array<i64: 256, 1>}, {transform_indices = @transform_1, window_bounds = array<i64: 17, 256>}, {transform_indices = @transform_2, window_bounds = array<i64: 16, 128>}]} {
    %c0_i32 = arith.constant 0 : i32
    %0 = arith.cmpi eq, %arg1, %c0_i32 : i32
    %1 = arith.extui %0 : i1 to i32
    %c0_i32_0 = arith.constant 0 : i32
    %2 = arith.cmpi ne, %1, %c0_i32_0 : i32
    scf.if %2 {
      %cst = arith.constant 0.000000e+00 : f32
      %17 = vector.broadcast %cst : f32 to vector<17x128xf32>
      %c0 = arith.constant 0 : index
      %c0_5 = arith.constant 0 : index
      %18 = vector.load %arg7[%c0, %c0_5] : memref<17x128xf32, #tpu.memory_space<vmem>>, vector<17x128xf32>
      tpu.vector_store %arg7[%c0, %c0_5], %17 {strides = array<i32>} : memref<17x128xf32, #tpu.memory_space<vmem>>, vector<17x128xf32>,
    } else {
    }
    %c128_i32 = arith.constant 128 : i32
    %3 = arith.muli %arg0, %c128_i32 : i32
    %4 = arith.index_cast %arg1 : i32 to index
    %5 = memref.load %arg3[%4] : memref<1xi32, #tpu.memory_space<smem>>
    %6 = arith.cmpi sge, %5, %3 : i32
    %7 = arith.index_cast %arg1 : i32 to index
    %8 = memref.load %arg2[%7] : memref<1xi32, #tpu.memory_space<smem>>
    %c128_i32_1 = arith.constant 128 : i32
    %9 = arith.addi %3, %c128_i32_1 : i32
    %10 = arith.cmpi slt, %8, %9 : i32
    %11 = arith.andi %6, %10 : i1
    %12 = arith.extui %11 : i1 to i32
    %c0_i32_2 = arith.constant 0 : i32
    %13 = arith.cmpi ne, %12, %c0_i32_2 : i32
    scf.if %13 {
      %c0 = arith.constant 0 : index
      %c0_5 = arith.constant 0 : index
      %17 = vector.load %arg5[%c0, %c0_5] : memref<17x256xf32, #tpu.memory_space<vmem>>, vector<17x256xf32>
      %18 = tpu.iota {dimensions = array<i32: 1>} : vector<256x128xi32>
      %19 = vector.broadcast %3 : i32 to vector<256x128xi32>
      %20 = arith.addi %19, %18 : vector<256x128xi32>
      %c0_6 = arith.constant 0 : index
      %c0_7 = arith.constant 0 : index
      %21 = vector.load %arg4[%c0_6, %c0_7] : memref<256x1xi32, #tpu.memory_space<vmem>>, vector<256x1xi32>
      %22 = vector.broadcast %21 : vector<256x1xi32> to vector<256x128xi32>
      %23 = arith.cmpi eq, %22, %20 : vector<256x128xi32>
      %24 = arith.extui %23 : vector<256x128xi1> to vector<256x128xi32>
      %25 = arith.sitofp %24 : vector<256x128xi32> to vector<256x128xf32>
      %c0_8 = arith.constant 0 : index
      %c0_9 = arith.constant 0 : index
      %26 = vector.load %arg7[%c0_8, %c0_9] : memref<17x128xf32, #tpu.memory_space<vmem>>, vector<17x128xf32>
      %cst = arith.constant dense<0.000000e+00> : vector<17x128xf32>
      %27 = tpu.matmul %17, %25, %cst {dimension_numbers = #tpu.dot_dimension_numbers<[1], [0], [0], [1], [0, 0, 1, 1], [], []>} : vector<17x256xf32>, vector<256x128xf32>, vector<17x128xf32> -> vector<17x128xf32>
      %28 = arith.addf %26, %27 : vector<17x128xf32>
      %c0_10 = arith.constant 0 : index
      %c0_11 = arith.constant 0 : index
      %29 = vector.load %arg7[%c0_10, %c0_11] : memref<17x128xf32, #tpu.memory_space<vmem>>, vector<17x128xf32>
      tpu.vector_store %arg7[%c0_10, %c0_11], %28 {strides = array<i32>} : memref<17x128xf32, #tpu.memory_space<vmem>>, vector<17x128xf32>,
    } else {
    }
    %c0_i32_3 = arith.constant 0 : i32
    %14 = arith.cmpi eq, %arg1, %c0_i32_3 : i32
    %15 = arith.extui %14 : i1 to i32
    %c0_i32_4 = arith.constant 0 : i32
    %16 = arith.cmpi ne, %15, %c0_i32_4 : i32
    scf.if %16 {
      %c0 = arith.constant 0 : index
      %c0_5 = arith.constant 0 : index
      %17 = vector.load %arg7[%c0, %c0_5] : memref<17x128xf32, #tpu.memory_space<vmem>>, vector<16x128xf32>
      %c16 = arith.constant 16 : index
      %c0_6 = arith.constant 0 : index
      %18 = vector.load %arg7[%c16, %c0_6] : memref<17x128xf32, #tpu.memory_space<vmem>>, vector<1x128xf32>
      %cst = arith.constant 1.000000e+00 : f32
      %19 = vector.broadcast %cst : f32 to vector<1x128xf32>
      %20 = arith.maximumf %18, %19 : vector<1x128xf32>
      %21 = tpu.reciprocal %20 : vector<1x128xf32> -> vector<1x128xf32>
      %22 = vector.broadcast %21 : vector<1x128xf32> to vector<16x128xf32>
      %23 = arith.mulf %17, %22 : vector<16x128xf32>
      %c0_7 = arith.constant 0 : index
      %c0_8 = arith.constant 0 : index
      %24 = vector.load %arg6[%c0_7, %c0_8] : memref<16x128xf32, #tpu.memory_space<vmem>>, vector<16x128xf32>
      tpu.vector_store %arg6[%c0_7, %c0_8], %23 {strides = array<i32>} : memref<16x128xf32, #tpu.memory_space<vmem>>, vector<16x128xf32>,
    } else {
    }
    return
  }
  func.func @transform_0(%arg0: i32, %arg1: i32, %arg2: memref<1xi32, #tpu.memory_space<smem>>, %arg3: memref<1xi32, #tpu.memory_space<smem>>) -> (i32, i32) {
    %c0_i32 = arith.constant 0 : i32
    %c0_i32_0 = arith.constant 0 : i32
    return %arg1, %c0_i32 : i32, i32
  }
  func.func @transform_1(%arg0: i32, %arg1: i32, %arg2: memref<1xi32, #tpu.memory_space<smem>>, %arg3: memref<1xi32, #tpu.memory_space<smem>>) -> (i32, i32) {
    %c0_i32 = arith.constant 0 : i32
    %c0_i32_0 = arith.constant 0 : i32
    return %c0_i32, %arg1 : i32, i32
  }
  func.func @transform_2(%arg0: i32, %arg1: i32, %arg2: memref<1xi32, #tpu.memory_space<smem>>, %arg3: memref<1xi32, #tpu.memory_space<smem>>) -> (i32, i32) {
    %c0_i32 = arith.constant 0 : i32
    %c0_i32_0 = arith.constant 0 : i32
    return %c0_i32, %arg0 : i32, i32
  }
}

</mosaic_0001>

<llo_original>
// kernel: tpu_custom_call.1
$region0: #{tpu_custom_call.1}
  #allocation0 [shape = 'u32[]', space=smem, size = 0x4, offset = 0x4, fixed_abs, tag = 'smem constant byte address 0x4 - core index']
  #allocation1 [shape = 'u32[144,128]{1,0:T(1,128)}', space=vmem, size = 0x12000, scoped, tag = 'internal scratch']
  #allocation2 [shape = 'f32[17,128]{1,0:T(8,128)}', space=vmem, size = 0x3000, scoped, tag = 'scratch operand']
  #allocation3 [shape = 's32[1]{0}', space=sflag, size = 0x4, scoped, tag = 'scoped memory for tpu_custom_call.1']
  #allocation4 [shape = 's32[1]{0:T(128)S(6)}', space=smem, size = 0x200, scoped, tag = 'prefetched SMEM operand 0']
  #allocation5 [shape = 's32[1]{0:T(128)S(6)}', space=smem, size = 0x200, scoped, tag = 'prefetched SMEM operand 1']
  %s0 = inlined_call_operand.<no memory space> [shape: s32[1], index: 0, kind: input, shape index: {}]
  %s1 = inlined_call_operand.<no memory space> [shape: s32[1], index: 1, kind: input, shape index: {}]
  %s2 = inlined_call_operand.vmem [shape: s32[256,1], index: 2, kind: input, shape index: {}]
  %s3 = inlined_call_operand.vmem [shape: f32[17,256], index: 3, kind: input, shape index: {}]
  %s4 = inlined_call_operand.hbm [shape: f32[16,128], index: 4, kind: output, shape index: {}]
  %s5 = sld [smem:[#allocation0]]
  $region30: #{tpu_custom_call.1} parent=0
    _
  %s7 = ssub.s32 1, %s5
  %s8 = scalar_select 0, %s7, %s5
  %9 = sst [smem:[#allocation4]] %s0
  %10 = sst [smem:[#allocation5]] %s1
  $region1: #{tpu_custom_call.1} parent=0
    #allocation6 [shape = 'u8[8192]{0}', space=vmem, size = 0x2000, scoped, tag = 'output window, operand 0, single buffered']
    #allocation7 [shape = 's32[1]{0}', space=sflag, size = 0x4, scoped, tag = 'scoped memory for tpu_custom_call.1']
    %11 = vsyncpa [#allocation7], 0
    // Predicated region
    $region2: #{tpu_custom_call.1} parent=1 // pred_check
      _
    $region3: #{tpu_custom_call.1} parent=1 // pred_check_branch
      %13 = sbr.rel (0) target = $region5
    $region4: #{tpu_custom_call.1} parent=1 // pred_region
      _
    $region5: #{tpu_custom_call.1} parent=1 // pred_fallthru
      _
    // Predicated region
    $region6: #{tpu_custom_call.1} parent=1 // pred_check
      _
    $region7: #{tpu_custom_call.1} parent=1 // pred_check_branch
      %15 = sbr.rel (0) target = $region9
    $region8: #{tpu_custom_call.1} parent=1 // pred_region
      _
    $region9: #{tpu_custom_call.1} parent=1 // pred_fallthru
      _
    %p16 = scmp.eq.s32.totalorder 0, 0
    // Predicated region
    $region10: #{tpu_custom_call.1} parent=1 // pred_check
      %p17 = pneg %p16
    $region11: #{tpu_custom_call.1} parent=1 // pred_check_branch
      %19 = sbr.rel (%p17) target = $region13
    $region12: #{tpu_custom_call.1} parent=1 // pred_region
      %20 = vst [vmem:[#allocation2] sm:$0xff] 0.0
      %21 = vst [vmem:[#allocation2 + $0x8] sm:$0xff] 0.0
      %22 = vst [vmem:[#allocation2 + $0x10] sm:$0x1] 0.0
    $region13: #{tpu_custom_call.1} parent=1 // pred_fallthru
      _
    %s23 = smul.u32 0, 128
    %s24 = sld [smem:[#allocation5]]
    %p25 = scmp.ge.s32.totalorder %s24, %s23
    %s26 = sld [smem:[#allocation4]]
    %s27 = sadd.s32 %s23, 128
    %p28 = scmp.lt.s32.totalorder %s26, %s27
    %p29 = pnand %p25, %p28
    %p30 = pneg %p29
    // Predicated region
    $region14: #{tpu_custom_call.1} parent=1 // pred_check
      _
    $region15: #{tpu_custom_call.1} parent=1 // pred_check_branch
      %32 = sbr.rel (%p29) target = $region17
    $region16: #{tpu_custom_call.1} parent=1 // pred_region
      %v33 = vld [vmem:[%s3] sm:$0xff]
      %v34 = vld [vmem:[%s3 + $0x8] sm:$0xff]
      %v35 = vld [vmem:[%s3 + $0x10] sm:$0xff]
      %v36 = vld [vmem:[%s3 + $0x18] sm:$0xff]
      %v37 = vld [vmem:[%s3 + $0x20] sm:$0x1]
      %v38 = vld [vmem:[%s3 + $0x28] sm:$0x1]
      %v39 = vlaneseq
      %v40 = vand.u32 %v39, 127
      %v41 = vstv %s23
      %v42 = vadd.s32 %v41, %v40
      %v43 = vld [vmem:[%s2] sm:$0xff]
      %v44 = vld [vmem:[%s2 + $0x8] sm:$0xff]
      %v45 = vld [vmem:[%s2 + $0x10] sm:$0xff]
      %v46 = vld [vmem:[%s2 + $0x18] sm:$0xff]
      %v47 = vld [vmem:[%s2 + $0x20] sm:$0xff]
      %v48 = vld [vmem:[%s2 + $0x28] sm:$0xff]
      %v49 = vld [vmem:[%s2 + $0x30] sm:$0xff]
      %v50 = vld [vmem:[%s2 + $0x38] sm:$0xff]
      %v51 = vld [vmem:[%s2 + $0x40] sm:$0xff]
      %v52 = vld [vmem:[%s2 + $0x48] sm:$0xff]
      %v53 = vld [vmem:[%s2 + $0x50] sm:$0xff]
      %v54 = vld [vmem:[%s2 + $0x58] sm:$0xff]
      %v55 = vld [vmem:[%s2 + $0x60] sm:$0xff]
      %v56 = vld [vmem:[%s2 + $0x68] sm:$0xff]
      %v57 = vld [vmem:[%s2 + $0x70] sm:$0xff]
      %v58 = vld [vmem:[%s2 + $0x78] sm:$0xff]
      %v59 = vld [vmem:[%s2 + $0x80] sm:$0xff]
      %v60 = vld [vmem:[%s2 + $0x88] sm:$0xff]
      %v61 = vld [vmem:[%s2 + $0x90] sm:$0xff]
      %v62 = vld [vmem:[%s2 + $0x98] sm:$0xff]
      %v63 = vld [vmem:[%s2 + $0xa0] sm:$0xff]
      %v64 = vld [vmem:[%s2 + $0xa8] sm:$0xff]
      %v65 = vld [vmem:[%s2 + $0xb0] sm:$0xff]
      %v66 = vld [vmem:[%s2 + $0xb8] sm:$0xff]
      %v67 = vld [vmem:[%s2 + $0xc0] sm:$0xff]
      %v68 = vld [vmem:[%s2 + $0xc8] sm:$0xff]
      %v69 = vld [vmem:[%s2 + $0xd0] sm:$0xff]
      %v70 = vld [vmem:[%s2 + $0xd8] sm:$0xff]
      %v71 = vld [vmem:[%s2 + $0xe0] sm:$0xff]
      %v72 = vld [vmem:[%s2 + $0xe8] sm:$0xff]
      %v73 = vld [vmem:[%s2 + $0xf0] sm:$0xff]
      %v74 = vld [vmem:[%s2 + $0xf8] sm:$0xff]
      %75 = vset.pattern.permute.xlu0 0
      %76 = vperm.xlu0 %75, %v43
      %v77 = vpop.permute.xlu0 %76
      %78 = vset.pattern.permute.xlu0 0
      %79 = vperm.xlu0 %78, %v44
      %v80 = vpop.permute.xlu0 %79
      %81 = vset.pattern.permute.xlu0 0
      %82 = vperm.xlu0 %81, %v45
      %v83 = vpop.permute.xlu0 %82
      %84 = vset.pattern.permute.xlu0 0
      %85 = vperm.xlu0 %84, %v46
      %v86 = vpop.permute.xlu0 %85
      %87 = vset.pattern.permute.xlu0 0
      %88 = vperm.xlu0 %87, %v47
      %v89 = vpop.permute.xlu0 %88
      %90 = vset.pattern.permute.xlu0 0
      %91 = vperm.xlu0 %90, %v48
      %v92 = vpop.permute.xlu0 %91
      %93 = vset.pattern.permute.xlu0 0
      %94 = vperm.xlu0 %93, %v49
      %v95 = vpop.permute.xlu0 %94
      %96 = vset.pattern.permute.xlu0 0
      %97 = vperm.xlu0 %96, %v50
      %v98 = vpop.permute.xlu0 %97
      %99 = vset.pattern.permute.xlu0 0
      %100 = vperm.xlu0 %99, %v51
      %v101 = vpop.permute.xlu0 %100
      %102 = vset.pattern.permute.xlu0 0
      %103 = vperm.xlu0 %102, %v52
      %v104 = vpop.permute.xlu0 %103
      %105 = vset.pattern.permute.xlu0 0
      %106 = vperm.xlu0 %105, %v53
      %v107 = vpop.permute.xlu0 %106
      %108 = vset.pattern.permute.xlu0 0
      %109 = vperm.xlu0 %108, %v54
      %v110 = vpop.permute.xlu0 %109
      %111 = vset.pattern.permute.xlu0 0
      %112 = vperm.xlu0 %111, %v55
      %v113 = vpop.permute.xlu0 %112
      %114 = vset.pattern.permute.xlu0 0
      %115 = vperm.xlu0 %114, %v56
      %v116 = vpop.permute.xlu0 %115
      %117 = vset.pattern.permute.xlu0 0
      %118 = vperm.xlu0 %117, %v57
      %v119 = vpop.permute.xlu0 %118
      %120 = vset.pattern.permute.xlu0 0
      %121 = vperm.xlu0 %120, %v58
      %v122 = vpop.permute.xlu0 %121
      %123 = vset.pattern.permute.xlu0 0
      %124 = vperm.xlu0 %123, %v59
      %v125 = vpop.permute.xlu0 %124
      %126 = vset.pattern.permute.xlu0 0
      %127 = vperm.xlu0 %126, %v60
      %v128 = vpop.permute.xlu0 %127
      %129 = vset.pattern.permute.xlu0 0
      %130 = vperm.xlu0 %129, %v61
      %v131 = vpop.permute.xlu0 %130
      %132 = vset.pattern.permute.xlu0 0
      %133 = vperm.xlu0 %132, %v62
      %v134 = vpop.permute.xlu0 %133
      %135 = vset.pattern.permute.xlu0 0
      %136 = vperm.xlu0 %135, %v63
      %v137 = vpop.permute.xlu0 %136
      %138 = vset.pattern.permute.xlu0 0
      %139 = vperm.xlu0 %138, %v64
      %v140 = vpop.permute.xlu0 %139
      %141 = vset.pattern.permute.xlu0 0
      %142 = vperm.xlu0 %141, %v65
      %v143 = vpop.permute.xlu0 %142
      %144 = vset.pattern.permute.xlu0 0
      %145 = vperm.xlu0 %144, %v66
      %v146 = vpop.permute.xlu0 %145
      %147 = vset.pattern.permute.xlu0 0
      %148 = vperm.xlu0 %147, %v67
      %v149 = vpop.permute.xlu0 %148
      %150 = vset.pattern.permute.xlu0 0
      %151 = vperm.xlu0 %150, %v68
      %v152 = vpop.permute.xlu0 %151
      %153 = vset.pattern.permute.xlu0 0
      %154 = vperm.xlu0 %153, %v69
      %v155 = vpop.permute.xlu0 %154
      %156 = vset.pattern.permute.xlu0 0
      %157 = vperm.xlu0 %156, %v70
      %v158 = vpop.permute.xlu0 %157
      %159 = vset.pattern.permute.xlu0 0
      %160 = vperm.xlu0 %159, %v71
      %v161 = vpop.permute.xlu0 %160
      %162 = vset.pattern.permute.xlu0 0
      %163 = vperm.xlu0 %162, %v72
      %v164 = vpop.permute.xlu0 %163
      %165 = vset.pattern.permute.xlu0 0
      %166 = vperm.xlu0 %165, %v73
      %v167 = vpop.permute.xlu0 %166
      %168 = vset.pattern.permute.xlu0 0
      %169 = vperm.xlu0 %168, %v74
      %v170 = vpop.permute.xlu0 %169
      %vm171 = vcmp.eq.s32.totalorder %v77, %v42
      %vm172 = vcmp.eq.s32.totalorder %v80, %v42
      %vm173 = vcmp.eq.s32.totalorder %v83, %v42
      %vm174 = vcmp.eq.s32.totalorder %v86, %v42
      %vm175 = vcmp.eq.s32.totalorder %v89, %v42
      %vm176 = vcmp.eq.s32.totalorder %v92, %v42
      %vm177 = vcmp.eq.s32.totalorder %v95, %v42
      %vm178 = vcmp.eq.s32.totalorder %v98, %v42
      %vm179 = vcmp.eq.s32.totalorder %v101, %v42
      %vm180 = vcmp.eq.s32.totalorder %v104, %v42
      %vm181 = vcmp.eq.s32.totalorder %v107, %v42
      %vm182 = vcmp.eq.s32.totalorder %v110, %v42
      %vm183 = vcmp.eq.s32.totalorder %v113, %v42
      %vm184 = vcmp.eq.s32.totalorder %v116, %v42
      %vm185 = vcmp.eq.s32.totalorder %v119, %v42
      %vm186 = vcmp.eq.s32.totalorder %v122, %v42
      %vm187 = vcmp.eq.s32.totalorder %v125, %v42
      %vm188 = vcmp.eq.s32.totalorder %v128, %v42
      %vm189 = vcmp.eq.s32.totalorder %v131, %v42
      %vm190 = vcmp.eq.s32.totalorder %v134, %v42
      %vm191 = vcmp.eq.s32.totalorder %v137, %v42
      %vm192 = vcmp.eq.s32.totalorder %v140, %v42
      %vm193 = vcmp.eq.s32.totalorder %v143, %v42
      %vm194 = vcmp.eq.s32.totalorder %v146, %v42
      %vm195 = vcmp.eq.s32.totalorder %v149, %v42
      %vm196 = vcmp.eq.s32.totalorder %v152, %v42
      %vm197 = vcmp.eq.s32.totalorder %v155, %v42
      %vm198 = vcmp.eq.s32.totalorder %v158, %v42
      %vm199 = vcmp.eq.s32.totalorder %v161, %v42
      %vm200 = vcmp.eq.s32.totalorder %v164, %v42
      %vm201 = vcmp.eq.s32.totalorder %v167, %v42
      %vm202 = vcmp.eq.s32.totalorder %v170, %v42
      %v203 = vsel %vm171, 1, 0
      %v204 = vsel %vm172, 1, 0
      %v205 = vsel %vm173, 1, 0
      %v206 = vsel %vm174, 1, 0
      %v207 = vsel %vm175, 1, 0
      %v208 = vsel %vm176, 1, 0
      %v209 = vsel %vm177, 1, 0
      %v210 = vsel %vm178, 1, 0
      %v211 = vsel %vm179, 1, 0
      %v212 = vsel %vm180, 1, 0
      %v213 = vsel %vm181, 1, 0
      %v214 = vsel %vm182, 1, 0
      %v215 = vsel %vm183, 1, 0
      %v216 = vsel %vm184, 1, 0
      %v217 = vsel %vm185, 1, 0
      %v218 = vsel %vm186, 1, 0
      %v219 = vsel %vm187, 1, 0
      %v220 = vsel %vm188, 1, 0
      %v221 = vsel %vm189, 1, 0
      %v222 = vsel %vm190, 1, 0
      %v223 = vsel %vm191, 1, 0
      %v224 = vsel %vm192, 1, 0
      %v225 = vsel %vm193, 1, 0
      %v226 = vsel %vm194, 1, 0
      %v227 = vsel %vm195, 1, 0
      %v228 = vsel %vm196, 1, 0
      %v229 = vsel %vm197, 1, 0
      %v230 = vsel %vm198, 1, 0
      %v231 = vsel %vm199, 1, 0
      %v232 = vsel %vm200, 1, 0
      %v233 = vsel %vm201, 1, 0
      %v234 = vsel %vm202, 1, 0
      %v235 = vcvt.s32.f32 %v203
      %v236 = vcvt.s32.f32 %v204
      %v237 = vcvt.s32.f32 %v205
      %v238 = vcvt.s32.f32 %v206
      %v239 = vcvt.s32.f32 %v207
      %v240 = vcvt.s32.f32 %v208
      %v241 = vcvt.s32.f32 %v209
      %v242 = vcvt.s32.f32 %v210
      %v243 = vcvt.s32.f32 %v211
      %v244 = vcvt.s32.f32 %v212
      %v245 = vcvt.s32.f32 %v213
      %v246 = vcvt.s32.f32 %v214
      %v247 = vcvt.s32.f32 %v215
      %v248 = vcvt.s32.f32 %v216
      %v249 = vcvt.s32.f32 %v217
      %v250 = vcvt.s32.f32 %v218
      %v251 = vcvt.s32.f32 %v219
      %v252 = vcvt.s32.f32 %v220
      %v253 = vcvt.s32.f32 %v221
      %v254 = vcvt.s32.f32 %v222
      %v255 = vcvt.s32.f32 %v223
      %v256 = vcvt.s32.f32 %v224
      %v257 = vcvt.s32.f32 %v225
      %v258 = vcvt.s32.f32 %v226
      %v259 = vcvt.s32.f32 %v227
      %v260 = vcvt.s32.f32 %v228
      %v261 = vcvt.s32.f32 %v229
      %v262 = vcvt.s32.f32 %v230
      %v263 = vcvt.s32.f32 %v231
      %v264 = vcvt.s32.f32 %v232
      %v265 = vcvt.s32.f32 %v233
      %v266 = vcvt.s32.f32 %v234
      %v267 = vld [vmem:[#allocation2] sm:$0xff]
      %v268 = vld [vmem:[#allocation2 + $0x8] sm:$0xff]
      %v269 = vld [vmem:[#allocation2 + $0x10] sm:$0x1]
      %270 = vmatprep.subr.mxu0 0.0
      %271 = vmatpush1.msra.mxu0 %v235
      %272 = vmatprep.subr.mxu0 0.0
      %273 = vmatpush1.msra.mxu0 %v236
      %274 = vmatprep.subr.mxu0 0.0
      %275 = vmatpush1.msra.mxu0 %v237
      %276 = vmatprep.subr.mxu0 0.0
      %277 = vmatpush1.msra.mxu0 %v238
      %278 = vmatprep.subr.mxu0 0.0
      %279 = vmatpush1.msra.mxu0 %v239
      %280 = vmatprep.subr.mxu0 0.0
      %281 = vmatpush1.msra.mxu0 %v240
      %282 = vmatprep.subr.mxu0 0.0
      %283 = vmatpush1.msra.mxu0 %v241
      %284 = vmatprep.subr.mxu0 0.0
      %285 = vmatpush1.msra.mxu0 %v242
      %286 = vmatprep.subr.mxu0 0.0
      %287 = vmatpush1.msra.mxu0 %v243
      %288 = vmatprep.subr.mxu0 0.0
      %289 = vmatpush1.msra.mxu0 %v244
      %290 = vmatprep.subr.mxu0 0.0
      %291 = vmatpush1.msra.mxu0 %v245
      %292 = vmatprep.subr.mxu0 0.0
      %293 = vmatpush1.msra.mxu0 %v246
      %294 = vmatprep.subr.mxu0 0.0
      %295 = vmatpush1.msra.mxu0 %v247
      %296 = vmatprep.subr.mxu0 0.0
      %297 = vmatpush1.msra.mxu0 %v248
      %298 = vmatprep.subr.mxu0 0.0
      %299 = vmatpush1.msra.mxu0 %v249
      %300 = vmatprep.subr.mxu0 0.0
      %301 = vmatpush1.msra.mxu0 %v250
      %302 = vmatprep.subr.mxu0 0.0
      %303 = vmatpush1.msra.mxu0 %v251
      %304 = vmatprep.subr.mxu0 0.0
      %305 = vmatpush1.msra.mxu0 %v252
      %306 = vmatprep.subr.mxu0 0.0
      %307 = vmatpush1.msra.mxu0 %v253
      %308 = vmatprep.subr.mxu0 0.0
      %309 = vmatpush1.msra.mxu0 %v254
      %310 = vmatprep.subr.mxu0 0.0
      %311 = vmatpush1.msra.mxu0 %v255
      %312 = vmatprep.subr.mxu0 0.0
      %313 = vmatpush1.msra.mxu0 %v256
      %314 = vmatprep.subr.mxu0 0.0
      %315 = vmatpush1.msra.mxu0 %v257
      %316 = vmatprep.subr.mxu0 0.0
      %317 = vmatpush1.msra.mxu0 %v258
      %318 = vmatprep.subr.mxu0 0.0
      %319 = vmatpush1.msra.mxu0 %v259
      %320 = vmatprep.subr.mxu0 0.0
      %321 = vmatpush1.msra.mxu0 %v260
      %322 = vmatprep.subr.mxu0 0.0
      %323 = vmatpush1.msra.mxu0 %v261
      %324 = vmatprep.subr.mxu0 0.0
      %325 = vmatpush1.msra.mxu0 %v262
      %326 = vmatprep.subr.mxu0 0.0
      %327 = vmatpush1.msra.mxu0 %v263
      %328 = vmatprep.subr.mxu0 0.0
      %329 = vmatpush1.msra.mxu0 %v264
      %330 = vmatprep.subr.mxu0 0.0
      %331 = vmatpush1.msra.mxu0 %v265
      %332 = vmatprep.subr.mxu0 0.0
      %333 = vmatpush1.msra.mxu0 %v266
      %334 = vmatprep.mubr.f32.mxu0 %v34
      %335 = vmatmul.mubr.f32.gmra.mrb[0].mxu0 %v33
      %v336 = vpop.f32.mrb[0].mxu0
      %v337 = vadd.f32 0.0, %v336
      %v338 = vpop.f32.mrb[0].mxu0
      %339 = vmatprep.mubr.f32.mxu0 %v36
      %340 = vmatmul.mubr.f32.gmra.mrb[0].mxu0 %v35
      %v341 = vpop.f32.mrb[0].mxu0
      %v342 = vadd.f32 0.0, %v341
      %v343 = vpop.f32.mrb[0].mxu0
      %344 = vmatprep.mubr.f32.mxu0 %v38
      %345 = vmatmul.mubr.f32.gmra.mrb[0].mxu0 %v37
      %v346 = vpop.f32.mrb[0].mxu0
      %v347 = vadd.f32 0.0, %v346
      %v348 = vpop.f32.mrb[0].mxu0
      %349 = vdwg.mxu0
      %v350 = vadd.f32 %v267, %v337
      %v351 = vadd.f32 %v268, %v342
      %v352 = vadd.f32 %v269, %v347
      %353 = vst [vmem:[#allocation2] sm:$0xff] %v350
      %354 = vst [vmem:[#allocation2 + $0x8] sm:$0xff] %v351
      %355 = vst [vmem:[#allocation2 + $0x10] sm:$0x1] %v352
    $region17: #{tpu_custom_call.1} parent=1 // pred_fallthru
      _
    // Predicated region
    $region18: #{tpu_custom_call.1} parent=1 // pred_check
      %p356 = pneg %p16
    $region19: #{tpu_custom_call.1} parent=1 // pred_check_branch
      %358 = sbr.rel (%p356) target = $region21
    $region20: #{tpu_custom_call.1} parent=1 // pred_region
      %v359 = vld [vmem:[#allocation2] sm:$0xff]
      %v360 = vld [vmem:[#allocation2 + $0x8] sm:$0xff]
      %v361 = vld [vmem:[#allocation2 + $0x10] sm:$0x1]
      %v362 = vmax.f32 %v361, 1.0
      %v363 = vrcp.pop %v362
      %v364 = vlaneseq
      %v365 = vshrl.u32 %v364, 7
      %v366 = vsub.s32 0, %v365
      %v367 = vrot.slane %v363, %v366
      %v368 = vmul.f32 %v359, %v367
      %v369 = vmul.f32 %v360, %v367
      %370 = vst [vmem:[#allocation6] sm:$0xff] %v368
      %371 = vst [vmem:[#allocation6 + $0x8] sm:$0xff] %v369
    $region21: #{tpu_custom_call.1} parent=1 // pred_fallthru
      _
    // Predicated region
    $region22: #{tpu_custom_call.1} parent=1 // pred_check
      _
    $region23: #{tpu_custom_call.1} parent=1 // pred_check_branch
      %373 = sbr.rel (0) target = $region25
    $region24: #{tpu_custom_call.1} parent=1 // pred_region
      %s375 = ssub.s32 256, 256
      %376 = vsyncadd [#allocation7], %s375
      %s377 = sshll.u32 [#allocation6], 4
      %s378 = int_to_ptr.vmem [resolvable:$true] %s377
      %383 = dma.vmem_to_hbm [thread:$0]  %s378, 256, %s4, [#allocation7], 128, 128, 8
    $region25: #{tpu_custom_call.1} parent=1 // pred_fallthru
      _
    // Predicated region
    $region26: #{tpu_custom_call.1} parent=1 // pred_check
      _
    $region27: #{tpu_custom_call.1} parent=1 // pred_check_branch
      %385 = sbr.rel (0) target = $region29
    $region28: #{tpu_custom_call.1} parent=1 // pred_region
      %386 = dma.done [#allocation7], 256
    $region29: #{tpu_custom_call.1} parent=1 // pred_fallthru
      _
    %387 = vsyncpa [#allocation7], 1

</llo_original>
